<compile_context>
chip_gen: v6e
topology: v6e:2x2x1
jax: 0.10.0
libtpu: 0.0.40
codegen_flags: <defaults>
</compile_context>

<pallas_src>
import jax
import jax.numpy as jnp
from jax.experimental import pallas as pl
from jax.experimental.pallas import tpu as pltpu


def _round_up(x, m):
    return ((x + m - 1) // m) * m


def _critic_kernel(obs_ref, wf_ref, bf_ref, w1_ref, b1_ref, wo_ref, bo_ref,
                   out_ref, x_ref):
    # NOTE on the scratch: this relies on (a) the N axis (axis 1) being the
    # innermost, serial ("arbitrary") grid axis and (b) megacore sharding
    # happening only along the "parallel" batch axis, so every core that
    # consumes x_ref for some batch tile also executed its nj == 0 step.
    @pl.when(pl.program_id(1) == 0)
    def _():
        # Fused first layer: obs @ blockdiag(wh, wk)  == [sh@wh, kc@wk].
        h = jnp.dot(obs_ref[...], wf_ref[...],
                    preferred_element_type=jnp.float32)
        h = jnp.maximum(h + bf_ref[...], 0.0)                 # f32 bias + ReLU
        # fc1 on the (already concatenated) hidden vector.
        x = jnp.dot(h.astype(jnp.bfloat16), w1_ref[...],
                    preferred_element_type=jnp.float32)
        x_ref[...] = jnp.maximum(x + b1_ref[...], 0.0).astype(jnp.bfloat16)

    # Output linear for this N tile (no activation), f32 accumulate + bias.
    out = jnp.dot(x_ref[...], wo_ref[...],
                  preferred_element_type=jnp.float32) + bo_ref[...]
    out_ref[...] = out.astype(out_ref.dtype)


def _spec(shape, index_map, *, single_buffer=False):
    """BlockSpec; single_buffer requests 1-deep buffering for grid-invariant
    operands (falls back to the default if the kwarg is unsupported)."""
    if single_buffer:
        try:
            return pl.BlockSpec(shape, index_map, pipeline_mode=pl.Buffered(1))
        except Exception:  # pragma: no cover - graceful degradation
            pass
    return pl.BlockSpec(shape, index_map)


def init_params(key, student_hidden_size, kc_emb_size, hidden_size,
                up_projection_size, num_questions):
    """PyTorch-nn.Linear-style init (uniform +-1/sqrt(fan_in)).

    Weights stored transposed as [in, out]; biases as [1, out]."""
    def linear(k, fan_in, fan_out):
        kw, kb = jax.random.split(k)
        bound = 1.0 / jnp.sqrt(fan_in)
        w = jax.random.uniform(kw, (fan_in, fan_out), jnp.float32, -bound, bound)
        b = jax.random.uniform(kb, (1, fan_out), jnp.float32, -bound, bound)
        return w, b

    k1, k2, k3, k4 = jax.random.split(key, 4)
    wh, bh = linear(k1, student_hidden_size, hidden_size)
    wk, bk = linear(k2, kc_emb_size, hidden_size)
    w1, b1 = linear(k3, 2 * hidden_size, up_projection_size)
    wo, bo = linear(k4, up_projection_size, num_questions)
    return dict(wh=wh, bh=bh, wk=wk, bk=bk, w1=w1, b1=b1, wo=wo, bo=bo)


def prepare_params(raw, *, batch_tile=512, lane=128):
    """One-time param prep: block-diagonal fusion, zero-padding of all
    contraction/output dims to the MXU granule, bf16 cast of matmul inputs,
    and a VMEM-aware choice of the output tile (TN) / wo residency."""
    wh, bh = raw["wh"], raw["bh"]
    wk, bk = raw["wk"], raw["bk"]
    w1, b1 = raw["w1"], raw["b1"]
    wo, bo = raw["wo"], raw["bo"]

    S, H = wh.shape
    K = wk.shape[0]
    H2 = 2 * H
    U = w1.shape[1]
    NQ = wo.shape[1]

    F = S + K
    F_pad = _round_up(F, lane)
    H2_pad = _round_up(H2, lane)
    U_pad = _round_up(U, lane)

    # Block-diagonal fusion of hidden_state_fc and kc_emb_fc (zero padding is
    # numerically transparent: padded inputs/rows/cols contribute exact zeros).
    wf = jnp.zeros((F_pad, H2_pad), jnp.float32)
    wf = wf.at[:S, :H].set(wh)
    wf = wf.at[S:S + K, H:H2].set(wk)
    bf = jnp.zeros((1, H2_pad), jnp.float32)
    bf = bf.at[:, :H].set(bh)
    bf = bf.at[:, H:H2].set(bk)

    w1p = jnp.zeros((H2_pad, U_pad), jnp.float32).at[:H2, :U].set(w1)
    b1p = jnp.zeros((1, U_pad), jnp.float32).at[:, :U].set(b1)

    # --- VMEM budget (per generation) -------------------------------------
    vmem_cap = 128 * 1024 * 1024
    try:
        info = pltpu.get_tpu_info()
        vmem_cap = int(getattr(info, "vmem_capacity_bytes", vmem_cap))
    except Exception:
        pass
    vmem_limit = min(int(0.75 * vmem_cap), 100 * 1024 * 1024)
    budget = int(0.85 * vmem_limit)       # headroom for compiler scratch

    TB_max = max(8, _round_up(batch_tile, 8))

    def usage(tn, wo_resident):
        resident = (F_pad * H2_pad * 2 + H2_pad * 4      # wf (bf16) + bf (f32)
                    + H2_pad * U_pad * 2 + U_pad * 4)    # w1 (bf16) + b1 (f32)
        obs_b = 2 * TB_max * F_pad * 2                   # double-buffered bf16
        wo_b = (1 if wo_resident else 2) * U_pad * tn * 2
        bo_b = (1 if wo_resident else 2) * tn * 4
        out_b = 2 * TB_max * tn * 4
        x_b = TB_max * U_pad * 2                         # bf16 scratch
        return resident + obs_b + wo_b + bo_b + out_b + x_b

    nq_full = _round_up(NQ, lane)
    if usage(nq_full, True) <= budget:
        TN, wo_resident = nq_full, True
    else:
        wo_resident = False
        TN = lane
        for cand in range(2048, lane - 1, -lane):
            if usage(cand, False) <= budget:
                TN = cand
                break
    NQ_pad = _round_up(NQ, TN)

    wop = jnp.zeros((U_pad, NQ_pad), jnp.float32).at[:U, :NQ].set(wo)
    bop = jnp.zeros((1, NQ_pad), jnp.float32).at[:, :NQ].set(bo)

    return dict(
        wf=wf.astype(jnp.bfloat16), bf=bf,
        w1=w1p.astype(jnp.bfloat16), b1=b1p,
        wo=wop.astype(jnp.bfloat16), bo=bop,
        meta=dict(F=F, F_pad=F_pad, H2_pad=H2_pad, U_pad=U_pad,
                  NQ=NQ, NQ_pad=NQ_pad, TN=TN, TB_max=TB_max,
                  wo_resident=wo_resident, vmem_limit=vmem_limit))


def critic_forward(obs, prepared):
    """Pallas forward of DiscreteSACValueKCCritic.  obs: [B, S+K] float32."""
    meta = prepared["meta"]
    F, F_pad = meta["F"], meta["F_pad"]
    H2_pad, U_pad = meta["H2_pad"], meta["U_pad"]
    NQ, NQ_pad, TN = meta["NQ"], meta["NQ_pad"], meta["TN"]
    TB_max, wo_resident = meta["TB_max"], meta["wo_resident"]

    B = obs.shape[0]
    assert obs.shape[1] == F, (obs.shape, F)

    # Batch tile: multiple of 8 sublanes, capped so the "parallel" batch axis
    # gets >= 2 tiles whenever the batch allows (v7x megacore utilization).
    if B <= 8:
        TB = _round_up(max(B, 1), 8)
    else:
        TB = min(TB_max, _round_up((B + 1) // 2, 8))
    B_pad = _round_up(B, TB)

    obs_p = obs
    if B_pad != B or F_pad != F:
        obs_p = jnp.pad(obs, ((0, B_pad - B), (0, F_pad - F)))
    obs_p = obs_p.astype(jnp.bfloat16)

    grid = (B_pad // TB, NQ_pad // TN)

    in_specs = [
        _spec((TB, F_pad), lambda bi, nj: (bi, 0)),                         # obs
        _spec((F_pad, H2_pad), lambda bi, nj: (0, 0), single_buffer=True),  # wf
        _spec((1, H2_pad), lambda bi, nj: (0, 0), single_buffer=True),      # bf
        _spec((H2_pad, U_pad), lambda bi, nj: (0, 0), single_buffer=True),  # w1
        _spec((1, U_pad), lambda bi, nj: (0, 0), single_buffer=True),       # b1
        _spec((U_pad, TN), lambda bi, nj: (0, nj), single_buffer=wo_resident),  # wo
        _spec((1, TN), lambda bi, nj: (0, nj), single_buffer=wo_resident),      # bo
    ]

    out = pl.pallas_call(
        _critic_kernel,
        out_shape=jax.ShapeDtypeStruct((B_pad, NQ_pad), jnp.float32),
        grid=grid,
        in_specs=in_specs,
        out_specs=pl.BlockSpec((TB, TN), lambda bi, nj: (bi, nj)),
        scratch_shapes=[pltpu.VMEM((TB, U_pad), jnp.bfloat16)],   # post-fc1 x
        compiler_params=pltpu.CompilerParams(
            dimension_semantics=("parallel", "arbitrary"),
            vmem_limit_bytes=meta["vmem_limit"]),
    )(obs_p, prepared["wf"], prepared["bf"], prepared["w1"], prepared["b1"],
      prepared["wo"], prepared["bo"])

    return out[:B, :NQ]


def reference_forward(obs, raw, student_hidden_size):
    """Pure-f32 reference matching the PyTorch module semantics."""
    sh = obs[:, :student_hidden_size]
    kc = obs[:, student_hidden_size:]
    h1 = jax.nn.relu(sh @ raw["wh"] + raw["bh"])
    h2 = jax.nn.relu(kc @ raw["wk"] + raw["bk"])
    cat = jnp.concatenate([h1, h2], axis=1)
    x = jax.nn.relu(cat @ raw["w1"] + raw["b1"])
    return x @ raw["wo"] + raw["bo"]


def reference_forward_bf16(obs, raw, student_hidden_size):
    """Reference applying the kernel's bf16-input / f32-accumulate recipe."""
    bf16 = jnp.bfloat16
    sh = obs[:, :student_hidden_size].astype(bf16)
    kc = obs[:, student_hidden_size:].astype(bf16)
    h1 = jax.nn.relu(jnp.dot(sh, raw["wh"].astype(bf16),
                             preferred_element_type=jnp.float32) + raw["bh"])
    h2 = jax.nn.relu(jnp.dot(kc, raw["wk"].astype(bf16),
                             preferred_element_type=jnp.float32) + raw["bk"])
    cat = jnp.concatenate([h1, h2], axis=1).astype(bf16)
    x = jax.nn.relu(jnp.dot(cat, raw["w1"].astype(bf16),
                            preferred_element_type=jnp.float32) + raw["b1"])
    x = x.astype(bf16)
    return jnp.dot(x, raw["wo"].astype(bf16),
                   preferred_element_type=jnp.float32) + raw["bo"]


if __name__ == "__main__":
    # Small shapes consistent with the module's constructor semantics.
    B = 8
    STUDENT_HIDDEN = 32
    KC_EMB = 64
    HIDDEN = 32
    UP_PROJ = 128
    NUM_Q = 256

    key = jax.random.PRNGKey(0)
    k_obs, k_params = jax.random.split(key)

    obs = jax.random.normal(k_obs, (B, STUDENT_HIDDEN + KC_EMB), jnp.float32)
    raw = init_params(k_params, STUDENT_HIDDEN, KC_EMB, HIDDEN, UP_PROJ, NUM_Q)
    prepared = prepare_params(raw)

    out = jax.block_until_ready(critic_forward(obs, prepared))

    ref_bf16 = jax.block_until_ready(
        reference_forward_bf16(obs, raw, STUDENT_HIDDEN))
    ref_f32 = jax.block_until_ready(
        reference_forward(obs, raw, STUDENT_HIDDEN))

    assert out.shape == (B, NUM_Q), out.shape
    # Tight check vs. a reference that uses the same bf16-input recipe.
    assert jnp.allclose(out, ref_bf16, atol=2e-3, rtol=2e-3), (
        float(jnp.max(jnp.abs(out - ref_bf16))))
    # Loose sanity check vs. the pure-f32 PyTorch-equivalent math
    # (bf16 inputs lose mantissa bits, accumulation stays f32).
    assert jnp.allclose(out, ref_f32, atol=6e-2, rtol=6e-2), (
        float(jnp.max(jnp.abs(out - ref_f32))))

    # TODO(synk): the optional CSV logging (self.log_path) is host-side file
    # IO with no Pallas equivalent; intentionally omitted.
    print("KERNEL_OK")
</pallas_src>

<mosaic_0001>
module attributes {stable_mosaic.version = 11 : i64} {
  func.func @_critic_kernel(%arg0: i32, %arg1: i32, %arg2: memref<8x128xbf16, #tpu.memory_space<vmem>>, %arg3: memref<128x128xbf16, #tpu.memory_space<vmem>>, %arg4: memref<1x128xf32, #tpu.memory_space<vmem>>, %arg5: memref<128x128xbf16, #tpu.memory_space<vmem>>, %arg6: memref<1x128xf32, #tpu.memory_space<vmem>>, %arg7: memref<128x256xbf16, #tpu.memory_space<vmem>>, %arg8: memref<1x256xf32, #tpu.memory_space<vmem>>, %arg9: memref<8x256xf32, #tpu.memory_space<vmem>>, %arg10: memref<8x128xbf16, #tpu.memory_space<vmem>>) attributes {dimension_semantics = [#tpu.dimension_semantics<parallel>, #tpu.dimension_semantics<arbitrary>], iteration_bounds = array<i64: 1, 1>, scalar_prefetch = 0 : i64, scratch_operands = 1 : i64, tpu.core_type = #tpu.core_type<tc>, window_params = [{transform_indices = @transform_0, window_bounds = array<i64: 8, 128>}, {pipeline_mode = #tpu.pipeline_mode<synchronous>, transform_indices = @transform_1, window_bounds = array<i64: 128, 128>}, {pipeline_mode = #tpu.pipeline_mode<synchronous>, transform_indices = @transform_2, window_bounds = array<i64: 1, 128>}, {pipeline_mode = #tpu.pipeline_mode<synchronous>, transform_indices = @transform_3, window_bounds = array<i64: 128, 128>}, {pipeline_mode = #tpu.pipeline_mode<synchronous>, transform_indices = @transform_4, window_bounds = array<i64: 1, 128>}, {pipeline_mode = #tpu.pipeline_mode<synchronous>, transform_indices = @transform_5, window_bounds = array<i64: 128, 256>}, {pipeline_mode = #tpu.pipeline_mode<synchronous>, transform_indices = @transform_6, window_bounds = array<i64: 1, 256>}, {transform_indices = @transform_7, window_bounds = array<i64: 8, 256>}]} {
    %c0_i32 = arith.constant 0 : i32
    %0 = arith.cmpi eq, %arg1, %c0_i32 : i32
    %1 = arith.extui %0 : i1 to i32
    %c0_i32_0 = arith.constant 0 : i32
    %2 = arith.cmpi ne, %1, %c0_i32_0 : i32
    scf.if %2 {
      %c0_8 = arith.constant 0 : index
      %c0_9 = arith.constant 0 : index
      %10 = vector.load %arg2[%c0_8, %c0_9] : memref<8x128xbf16, #tpu.memory_space<vmem>>, vector<8x128xbf16>
      %c0_10 = arith.constant 0 : index
      %c0_11 = arith.constant 0 : index
      %11 = vector.load %arg3[%c0_10, %c0_11] : memref<128x128xbf16, #tpu.memory_space<vmem>>, vector<128x128xbf16>
      %cst_12 = arith.constant dense<0.000000e+00> : vector<8x128xf32>
      %12 = tpu.matmul %10, %11, %cst_12 {dimension_numbers = #tpu.dot_dimension_numbers<[1], [0], [0], [1], [0, 0, 1, 1], [], []>} : vector<8x128xbf16>, vector<128x128xbf16>, vector<8x128xf32> -> vector<8x128xf32>
      %c0_13 = arith.constant 0 : index
      %c0_14 = arith.constant 0 : index
      %13 = vector.load %arg4[%c0_13, %c0_14] : memref<1x128xf32, #tpu.memory_space<vmem>>, vector<1x128xf32>
      %14 = vector.broadcast %13 : vector<1x128xf32> to vector<8x128xf32>
      %15 = arith.addf %12, %14 : vector<8x128xf32>
      %cst_15 = arith.constant 0.000000e+00 : f32
      %16 = vector.broadcast %cst_15 : f32 to vector<8x128xf32>
      %17 = arith.maximumf %15, %16 : vector<8x128xf32>
      %18 = arith.truncf %17 : vector<8x128xf32> to vector<8x128xbf16>
      %c0_16 = arith.constant 0 : index
      %c0_17 = arith.constant 0 : index
      %19 = vector.load %arg5[%c0_16, %c0_17] : memref<128x128xbf16, #tpu.memory_space<vmem>>, vector<128x128xbf16>
      %cst_18 = arith.constant dense<0.000000e+00> : vector<8x128xf32>
      %20 = tpu.matmul %18, %19, %cst_18 {dimension_numbers = #tpu.dot_dimension_numbers<[1], [0], [0], [1], [0, 0, 1, 1], [], []>} : vector<8x128xbf16>, vector<128x128xbf16>, vector<8x128xf32> -> vector<8x128xf32>
      %c0_19 = arith.constant 0 : index
      %c0_20 = arith.constant 0 : index
      %21 = vector.load %arg6[%c0_19, %c0_20] : memref<1x128xf32, #tpu.memory_space<vmem>>, vector<1x128xf32>
      %22 = vector.broadcast %21 : vector<1x128xf32> to vector<8x128xf32>
      %23 = arith.addf %20, %22 : vector<8x128xf32>
      %cst_21 = arith.constant 0.000000e+00 : f32
      %24 = vector.broadcast %cst_21 : f32 to vector<8x128xf32>
      %25 = arith.maximumf %23, %24 : vector<8x128xf32>
      %26 = arith.truncf %25 : vector<8x128xf32> to vector<8x128xbf16>
      %c0_22 = arith.constant 0 : index
      %c0_23 = arith.constant 0 : index
      %27 = vector.load %arg10[%c0_22, %c0_23] : memref<8x128xbf16, #tpu.memory_space<vmem>>, vector<8x128xbf16>
      tpu.vector_store %arg10[%c0_22, %c0_23], %26 {strides = array<i32>} : memref<8x128xbf16, #tpu.memory_space<vmem>>, vector<8x128xbf16>,
    } else {
    }
    %c0 = arith.constant 0 : index
    %c0_1 = arith.constant 0 : index
    %3 = vector.load %arg10[%c0, %c0_1] : memref<8x128xbf16, #tpu.memory_space<vmem>>, vector<8x128xbf16>
    %c0_2 = arith.constant 0 : index
    %c0_3 = arith.constant 0 : index
    %4 = vector.load %arg7[%c0_2, %c0_3] : memref<128x256xbf16, #tpu.memory_space<vmem>>, vector<128x256xbf16>
    %cst = arith.constant dense<0.000000e+00> : vector<8x256xf32>
    %5 = tpu.matmul %3, %4, %cst {dimension_numbers = #tpu.dot_dimension_numbers<[1], [0], [0], [1], [0, 0, 1, 1], [], []>} : vector<8x128xbf16>, vector<128x256xbf16>, vector<8x256xf32> -> vector<8x256xf32>
    %c0_4 = arith.constant 0 : index
    %c0_5 = arith.constant 0 : index
    %6 = vector.load %arg8[%c0_4, %c0_5] : memref<1x256xf32, #tpu.memory_space<vmem>>, vector<1x256xf32>
    %7 = vector.broadcast %6 : vector<1x256xf32> to vector<8x256xf32>
    %8 = arith.addf %5, %7 : vector<8x256xf32>
    %c0_6 = arith.constant 0 : index
    %c0_7 = arith.constant 0 : index
    %9 = vector.load %arg9[%c0_6, %c0_7] : memref<8x256xf32, #tpu.memory_space<vmem>>, vector<8x256xf32>
    tpu.vector_store %arg9[%c0_6, %c0_7], %8 {strides = array<i32>} : memref<8x256xf32, #tpu.memory_space<vmem>>, vector<8x256xf32>,
    return
  }
  func.func @transform_0(%arg0: i32, %arg1: i32) -> (i32, i32) {
    %c0_i32 = arith.constant 0 : i32
    %c0_i32_0 = arith.constant 0 : i32
    return %arg0, %c0_i32 : i32, i32
  }
  func.func @transform_1(%arg0: i32, %arg1: i32) -> (i32, i32) {
    %c0_i32 = arith.constant 0 : i32
    %c0_i32_0 = arith.constant 0 : i32
    %c0_i32_1 = arith.constant 0 : i32
    return %c0_i32, %c0_i32_0 : i32, i32
  }
  func.func @transform_2(%arg0: i32, %arg1: i32) -> (i32, i32) {
    %c0_i32 = arith.constant 0 : i32
    %c0_i32_0 = arith.constant 0 : i32
    %c0_i32_1 = arith.constant 0 : i32
    return %c0_i32, %c0_i32_0 : i32, i32
  }
  func.func @transform_3(%arg0: i32, %arg1: i32) -> (i32, i32) {
    %c0_i32 = arith.constant 0 : i32
    %c0_i32_0 = arith.constant 0 : i32
    %c0_i32_1 = arith.constant 0 : i32
    return %c0_i32, %c0_i32_0 : i32, i32
  }
  func.func @transform_4(%arg0: i32, %arg1: i32) -> (i32, i32) {
    %c0_i32 = arith.constant 0 : i32
    %c0_i32_0 = arith.constant 0 : i32
    %c0_i32_1 = arith.constant 0 : i32
    return %c0_i32, %c0_i32_0 : i32, i32
  }
  func.func @transform_5(%arg0: i32, %arg1: i32) -> (i32, i32) {
    %c0_i32 = arith.constant 0 : i32
    %c0_i32_0 = arith.constant 0 : i32
    return %c0_i32, %arg1 : i32, i32
  }
  func.func @transform_6(%arg0: i32, %arg1: i32) -> (i32, i32) {
    %c0_i32 = arith.constant 0 : i32
    %c0_i32_0 = arith.constant 0 : i32
    return %c0_i32, %arg1 : i32, i32
  }
  func.func @transform_7(%arg0: i32, %arg1: i32) -> (i32, i32) {
    %c0_i32 = arith.constant 0 : i32
    return %arg0, %arg1 : i32, i32
  }
}

</mosaic_0001>

<llo_original>
// kernel: tpu_custom_call.1
$region0: #{tpu_custom_call.1}
  #allocation0 [shape = 'u32[]', space=smem, size = 0x4, offset = 0x4, fixed_abs, tag = 'smem constant byte address 0x4 - core index']
  #allocation1 [shape = 'u32[144,128]{1,0:T(1,128)}', space=vmem, size = 0x12000, scoped, tag = 'internal scratch']
  #allocation2 [shape = 'bf16[8,128]{1,0:T(8,128)(2,1)}', space=vmem, size = 0x800, scoped, tag = 'scratch operand']
  %s0 = inlined_call_operand.hbm [shape: bf16[8,128], index: 0, kind: input, shape index: {}]
  %s1 = inlined_call_operand.hbm [shape: bf16[128,128], index: 1, kind: input, shape index: {}]
  %s2 = inlined_call_operand.vmem [shape: f32[1,128], index: 2, kind: input, shape index: {}]
  %s3 = inlined_call_operand.hbm [shape: bf16[128,128], index: 3, kind: input, shape index: {}]
  %s4 = inlined_call_operand.vmem [shape: f32[1,128], index: 4, kind: input, shape index: {}]
  %s5 = inlined_call_operand.hbm [shape: bf16[128,256], index: 5, kind: input, shape index: {}]
  %s6 = inlined_call_operand.vmem [shape: f32[1,256], index: 6, kind: input, shape index: {}]
  %s7 = inlined_call_operand.hbm [shape: f32[8,256], index: 7, kind: output, shape index: {}]
  %s8 = sld [smem:[#allocation0]]
  $region58: #{tpu_custom_call.1} parent=0
    _
  %s10 = ssub.s32 1, %s8
  %s11 = scalar_select 0, %s10, %s8
  $region1: #{tpu_custom_call.1} parent=0
    #allocation3 [shape = 'u8[2048]{0}', space=vmem, size = 0x800, scoped, tag = 'input window, operand 0, single buffered']
    #allocation4 [shape = 's32[1]{0}', space=sflag, size = 0x4, scoped, tag = 'scoped memory for tpu_custom_call.1']
    #allocation5 [shape = 's32[1]{0}', space=sflag, size = 0x4, scoped, tag = 'scoped memory for tpu_custom_call.1']
    #allocation6 [shape = 'u8[32768]{0}', space=vmem, size = 0x8000, scoped, tag = 'input window, operand 1, single buffered']
    #allocation7 [shape = 's32[1]{0}', space=sflag, size = 0x4, scoped, tag = 'scoped memory for tpu_custom_call.1']
    #allocation8 [shape = 'u8[32768]{0}', space=vmem, size = 0x8000, scoped, tag = 'input window, operand 3, single buffered']
    #allocation9 [shape = 'u8[65536]{0}', space=vmem, size = 0x10000, scoped, tag = 'input window, operand 5, single buffered']
    #allocation10 [shape = 's32[1]{0}', space=sflag, size = 0x4, scoped, tag = 'scoped memory for tpu_custom_call.1']
    #allocation11 [shape = 'u8[8192]{0}', space=vmem, size = 0x2000, scoped, tag = 'output window, operand 0, single buffered']
    %12 = vsyncpa [#allocation4], 0
    %13 = vsyncpa [#allocation7], 0
    %14 = vsyncpa [#allocation10], 0
    %15 = vsyncpa [#allocation5], 0
    // Predicated region
    $region2: #{tpu_custom_call.1} parent=1 // pred_check
      _
    $region3: #{tpu_custom_call.1} parent=1 // pred_check_branch
      %17 = sbr.rel (0) target = $region5
    $region4: #{tpu_custom_call.1} parent=1 // pred_region
      %s19 = ssub.s32 64, 64
      %20 = vsyncadd [#allocation4], %s19
      %s22 = sshll.u32 [#allocation3], 4
      %s23 = int_to_ptr.vmem [resolvable:$true] %s22
      %25 = dma.hbm_to_vmem [thread:$0]  %s0, 64, %s23, [#allocation4]
    $region5: #{tpu_custom_call.1} parent=1 // pred_fallthru
      _
    // Predicated region
    $region6: #{tpu_custom_call.1} parent=1 // pred_check
      _
    $region7: #{tpu_custom_call.1} parent=1 // pred_check_branch
      %27 = sbr.rel (0) target = $region9
    $region8: #{tpu_custom_call.1} parent=1 // pred_region
      %s29 = ssub.s32 1024, 1024
      %30 = vsyncadd [#allocation7], %s29
      %s31 = sshll.u32 [#allocation6], 4
      %s32 = int_to_ptr.vmem [resolvable:$true] %s31
      %37 = dma.hbm_to_vmem [thread:$0]  %s1, 1024, %s32, [#allocation7], 64, 64, 4
    $region9: #{tpu_custom_call.1} parent=1 // pred_fallthru
      _
    // Predicated region
    $region10: #{tpu_custom_call.1} parent=1 // pred_check
      _
    $region11: #{tpu_custom_call.1} parent=1 // pred_check_branch
      %39 = sbr.rel (0) target = $region13
    $region12: #{tpu_custom_call.1} parent=1 // pred_region
      _
    $region13: #{tpu_custom_call.1} parent=1 // pred_fallthru
      _
    // Predicated region
    $region14: #{tpu_custom_call.1} parent=1 // pred_check
      _
    $region15: #{tpu_custom_call.1} parent=1 // pred_check_branch
      %41 = sbr.rel (0) target = $region17
    $region16: #{tpu_custom_call.1} parent=1 // pred_region
      %s43 = ssub.s32 1024, 1024
      %44 = vsyncadd [#allocation7], %s43
      %s45 = sshll.u32 [#allocation8], 4
      %s46 = int_to_ptr.vmem [resolvable:$true] %s45
      %51 = dma.hbm_to_vmem [thread:$0]  %s3, 1024, %s46, [#allocation7], 64, 64, 4
    $region17: #{tpu_custom_call.1} parent=1 // pred_fallthru
      _
    // Predicated region
    $region18: #{tpu_custom_call.1} parent=1 // pred_check
      _
    $region19: #{tpu_custom_call.1} parent=1 // pred_check_branch
      %53 = sbr.rel (0) target = $region21
    $region20: #{tpu_custom_call.1} parent=1 // pred_region
      _
    $region21: #{tpu_custom_call.1} parent=1 // pred_fallthru
      _
    // Predicated region
    $region22: #{tpu_custom_call.1} parent=1 // pred_check
      _
    $region23: #{tpu_custom_call.1} parent=1 // pred_check_branch
      %55 = sbr.rel (0) target = $region25
    $region24: #{tpu_custom_call.1} parent=1 // pred_region
      %s57 = ssub.s32 2048, 2048
      %58 = vsyncadd [#allocation10], %s57
      %s59 = sshll.u32 [#allocation9], 4
      %s60 = int_to_ptr.vmem [resolvable:$true] %s59
      %65 = dma.hbm_to_vmem [thread:$0]  %s5, 2048, %s60, [#allocation10], 128, 128, 8
    $region25: #{tpu_custom_call.1} parent=1 // pred_fallthru
      _
    // Predicated region
    $region26: #{tpu_custom_call.1} parent=1 // pred_check
      _
    $region27: #{tpu_custom_call.1} parent=1 // pred_check_branch
      %67 = sbr.rel (0) target = $region29
    $region28: #{tpu_custom_call.1} parent=1 // pred_region
      _
    $region29: #{tpu_custom_call.1} parent=1 // pred_fallthru
      _
    // Predicated region
    $region30: #{tpu_custom_call.1} parent=1 // pred_check
      _
    $region31: #{tpu_custom_call.1} parent=1 // pred_check_branch
      %69 = sbr.rel (0) target = $region33
    $region32: #{tpu_custom_call.1} parent=1 // pred_region
      %70 = dma.done [#allocation4], 64
    $region33: #{tpu_custom_call.1} parent=1 // pred_fallthru
      _
    // Predicated region
    $region34: #{tpu_custom_call.1} parent=1 // pred_check
      _
    $region35: #{tpu_custom_call.1} parent=1 // pred_check_branch
      %72 = sbr.rel (0) target = $region37
    $region36: #{tpu_custom_call.1} parent=1 // pred_region
      %73 = dma.done [#allocation7], 1024
    $region37: #{tpu_custom_call.1} parent=1 // pred_fallthru
      _
    // Predicated region
    $region38: #{tpu_custom_call.1} parent=1 // pred_check
      _
    $region39: #{tpu_custom_call.1} parent=1 // pred_check_branch
      %75 = sbr.rel (0) target = $region41
    $region40: #{tpu_custom_call.1} parent=1 // pred_region
      %76 = dma.done [#allocation7], 1024
    $region41: #{tpu_custom_call.1} parent=1 // pred_fallthru
      _
    // Predicated region
    $region42: #{tpu_custom_call.1} parent=1 // pred_check
      _
    $region43: #{tpu_custom_call.1} parent=1 // pred_check_branch
      %78 = sbr.rel (0) target = $region45
    $region44: #{tpu_custom_call.1} parent=1 // pred_region
      %79 = dma.done [#allocation10], 2048
    $region45: #{tpu_custom_call.1} parent=1 // pred_fallthru
      _
    %p81 = scmp.eq.s32.totalorder 0, 0
    // Predicated region
    $region46: #{tpu_custom_call.1} parent=1 // pred_check
      %p82 = pneg %p81
    $region47: #{tpu_custom_call.1} parent=1 // pred_check_branch
      %84 = sbr.rel (%p82) target = $region49
    $region48: #{tpu_custom_call.1} parent=1 // pred_region
      %v85 = vld [vmem:[#allocation3] sm:$0xf]
      %v86 = vld [vmem:[#allocation6] sm:$0xf]
      %v87 = vld [vmem:[#allocation6 + $0x4] sm:$0xf]
      %v88 = vld [vmem:[#allocation6 + $0x8] sm:$0xf]
      %v89 = vld [vmem:[#allocation6 + $0xc] sm:$0xf]
      %v90 = vld [vmem:[#allocation6 + $0x10] sm:$0xf]
      %v91 = vld [vmem:[#allocation6 + $0x14] sm:$0xf]
      %v92 = vld [vmem:[#allocation6 + $0x18] sm:$0xf]
      %v93 = vld [vmem:[#allocation6 + $0x1c] sm:$0xf]
      %v94 = vld [vmem:[#allocation6 + $0x20] sm:$0xf]
      %v95 = vld [vmem:[#allocation6 + $0x24] sm:$0xf]
      %v96 = vld [vmem:[#allocation6 + $0x28] sm:$0xf]
      %v97 = vld [vmem:[#allocation6 + $0x2c] sm:$0xf]
      %v98 = vld [vmem:[#allocation6 + $0x30] sm:$0xf]
      %v99 = vld [vmem:[#allocation6 + $0x34] sm:$0xf]
      %v100 = vld [vmem:[#allocation6 + $0x38] sm:$0xf]
      %v101 = vld [vmem:[#allocation6 + $0x3c] sm:$0xf]
      %v102 = vld [vmem:[%s2] sm:$0x1]
      %v104 = vlaneseq
      %v105 = vshrl.u32 %v104, 7
      %v106 = vsub.s32 0, %v105
      %v107 = vrot.slane %v102, %v106
      %v125 = vunpack.c.l.b16 %v86
      %v126 = vunpack.c.l.b16 %v87
      %v127 = vunpack.c.l.b16 %v88
      %v128 = vunpack.c.l.b16 %v89
      %v129 = vunpack.c.l.b16 %v90
      %v130 = vunpack.c.l.b16 %v91
      %v131 = vunpack.c.l.b16 %v92
      %v132 = vunpack.c.l.b16 %v93
      %v133 = vunpack.c.l.b16 %v94
      %v134 = vunpack.c.l.b16 %v95
      %v135 = vunpack.c.l.b16 %v96
      %v136 = vunpack.c.l.b16 %v97
      %v137 = vunpack.c.l.b16 %v98
      %v138 = vunpack.c.l.b16 %v99
      %v139 = vunpack.c.l.b16 %v100
      %v140 = vunpack.c.l.b16 %v101
      %v141 = vpack.c.b16 %v126, %v125
      %v142 = vpack.c.b16 %v128, %v127
      %v143 = vpack.c.b16 %v130, %v129
      %v144 = vpack.c.b16 %v132, %v131
      %v145 = vpack.c.b16 %v134, %v133
      %v146 = vpack.c.b16 %v136, %v135
      %v147 = vpack.c.b16 %v138, %v137
      %v148 = vpack.c.b16 %v140, %v139
      %157 = vmatprep.subr.bf16.mxu0 0
      %158 = vmatpush1.bf16.msra.mxu0 %v148
      %159 = vmatprep.subr.bf16.mxu0 0
      %160 = vmatpush1.bf16.msra.mxu0 %v147
      %161 = vmatprep.subr.bf16.mxu0 0
      %162 = vmatpush1.bf16.msra.mxu0 %v146
      %163 = vmatprep.subr.bf16.mxu0 0
      %164 = vmatpush1.bf16.msra.mxu0 %v145
      %165 = vmatprep.subr.bf16.mxu0 0
      %166 = vmatpush1.bf16.msra.mxu0 %v144
      %167 = vmatprep.subr.bf16.mxu0 0
      %168 = vmatpush1.bf16.msra.mxu0 %v143
      %169 = vmatprep.subr.bf16.mxu0 0
      %170 = vmatpush1.bf16.msra.mxu0 %v142
      %171 = vmatprep.subr.bf16.mxu0 0
      %172 = vmatpush1.bf16.msra.mxu0 %v141
      %173 = vmatprep.subr.bf16.mxu0 0
      %174 = vmatpush2.bf16.msra.mxu0 0
      %175 = vmatprep.subr.bf16.mxu0 0
      %176 = vmatpush2.bf16.msra.mxu0 0
      %177 = vmatprep.subr.bf16.mxu0 0
      %178 = vmatpush2.bf16.msra.mxu0 0
      %179 = vmatprep.subr.bf16.mxu0 0
      %180 = vmatpush2.bf16.msra.mxu0 0
      %181 = vmatprep.subr.bf16.mxu0 0
      %182 = vmatpush2.bf16.msra.mxu0 0
      %183 = vmatprep.subr.bf16.mxu0 0
      %184 = vmatpush2.bf16.msra.mxu0 0
      %185 = vmatprep.subr.bf16.mxu0 0
      %186 = vmatpush2.bf16.msra.mxu0 0
      %187 = vmatprep.subr.bf16.mxu0 0
      %188 = vmatpush2.bf16.msra.mxu0 0
      %189 = vmatprep.mubr.bf16.mxu0 0
      %190 = vmatmul.mubr.bf16.gmra.mxu0 %v85
      %v191 = vpop.f32.mrf.mxu0
      %v192 = vadd.f32 %v107, %v191
      %v193 = vpop.f32.mrf.mxu0
      %v194 = vpop.f32.mrf.mxu0
      %v195 = vpop.f32.mrf.mxu0
      %196 = vdwg.mxu0
      %v197 = vmax.f32 %v192, 0.0
      %v198 = vpack.c.bf16 %v197, %v197
      %v199 = vld [vmem:[#allocation8] sm:$0xf]
      %v200 = vld [vmem:[#allocation8 + $0x4] sm:$0xf]
      %v201 = vld [vmem:[#allocation8 + $0x8] sm:$0xf]
      %v202 = vld [vmem:[#allocation8 + $0xc] sm:$0xf]
      %v203 = vld [vmem:[#allocation8 + $0x10] sm:$0xf]
      %v204 = vld [vmem:[#allocation8 + $0x14] sm:$0xf]
      %v205 = vld [vmem:[#allocation8 + $0x18] sm:$0xf]
      %v206 = vld [vmem:[#allocation8 + $0x1c] sm:$0xf]
      %v207 = vld [vmem:[#allocation8 + $0x20] sm:$0xf]
      %v208 = vld [vmem:[#allocation8 + $0x24] sm:$0xf]
      %v209 = vld [vmem:[#allocation8 + $0x28] sm:$0xf]
      %v210 = vld [vmem:[#allocation8 + $0x2c] sm:$0xf]
      %v211 = vld [vmem:[#allocation8 + $0x30] sm:$0xf]
      %v212 = vld [vmem:[#allocation8 + $0x34] sm:$0xf]
      %v213 = vld [vmem:[#allocation8 + $0x38] sm:$0xf]
      %v214 = vld [vmem:[#allocation8 + $0x3c] sm:$0xf]
      %v215 = vld [vmem:[%s4] sm:$0x1]
      %v217 = vlaneseq
      %v218 = vshrl.u32 %v217, 7
      %v219 = vsub.s32 0, %v218
      %v220 = vrot.slane %v215, %v219
      %v238 = vunpack.c.l.b16 %v199
      %v239 = vunpack.c.l.b16 %v200
      %v240 = vunpack.c.l.b16 %v201
      %v241 = vunpack.c.l.b16 %v202
      %v242 = vunpack.c.l.b16 %v203
      %v243 = vunpack.c.l.b16 %v204
      %v244 = vunpack.c.l.b16 %v205
      %v245 = vunpack.c.l.b16 %v206
      %v246 = vunpack.c.l.b16 %v207
      %v247 = vunpack.c.l.b16 %v208
      %v248 = vunpack.c.l.b16 %v209
      %v249 = vunpack.c.l.b16 %v210
      %v250 = vunpack.c.l.b16 %v211
      %v251 = vunpack.c.l.b16 %v212
      %v252 = vunpack.c.l.b16 %v213
      %v253 = vunpack.c.l.b16 %v214
      %v254 = vpack.c.b16 %v239, %v238
      %v255 = vpack.c.b16 %v241, %v240
      %v256 = vpack.c.b16 %v243, %v242
      %v257 = vpack.c.b16 %v245, %v244
      %v258 = vpack.c.b16 %v247, %v246
      %v259 = vpack.c.b16 %v249, %v248
      %v260 = vpack.c.b16 %v251, %v250
      %v261 = vpack.c.b16 %v253, %v252
      %270 = vmatprep.subr.bf16.mxu0 0
      %271 = vmatpush1.bf16.msra.mxu0 %v261
      %272 = vmatprep.subr.bf16.mxu0 0
      %273 = vmatpush1.bf16.msra.mxu0 %v260
      %274 = vmatprep.subr.bf16.mxu0 0
      %275 = vmatpush1.bf16.msra.mxu0 %v259
      %276 = vmatprep.subr.bf16.mxu0 0
      %277 = vmatpush1.bf16.msra.mxu0 %v258
      %278 = vmatprep.subr.bf16.mxu0 0
      %279 = vmatpush1.bf16.msra.mxu0 %v257
      %280 = vmatprep.subr.bf16.mxu0 0
      %281 = vmatpush1.bf16.msra.mxu0 %v256
      %282 = vmatprep.subr.bf16.mxu0 0
      %283 = vmatpush1.bf16.msra.mxu0 %v255
      %284 = vmatprep.subr.bf16.mxu0 0
      %285 = vmatpush1.bf16.msra.mxu0 %v254
      %286 = vmatprep.subr.bf16.mxu0 0
      %287 = vmatpush2.bf16.msra.mxu0 0
      %288 = vmatprep.subr.bf16.mxu0 0
      %289 = vmatpush2.bf16.msra.mxu0 0
      %290 = vmatprep.subr.bf16.mxu0 0
      %291 = vmatpush2.bf16.msra.mxu0 0
      %292 = vmatprep.subr.bf16.mxu0 0
      %293 = vmatpush2.bf16.msra.mxu0 0
      %294 = vmatprep.subr.bf16.mxu0 0
      %295 = vmatpush2.bf16.msra.mxu0 0
      %296 = vmatprep.subr.bf16.mxu0 0
      %297 = vmatpush2.bf16.msra.mxu0 0
      %298 = vmatprep.subr.bf16.mxu0 0
      %299 = vmatpush2.bf16.msra.mxu0 0
      %300 = vmatprep.subr.bf16.mxu0 0
      %301 = vmatpush2.bf16.msra.mxu0 0
      %302 = vmatprep.mubr.bf16.mxu0 0
      %303 = vmatmul.mubr.bf16.gmra.mxu0 %v198
      %v304 = vpop.f32.mrf.mxu0
      %v305 = vadd.f32 %v220, %v304
      %v306 = vpop.f32.mrf.mxu0
      %v307 = vpop.f32.mrf.mxu0
      %v308 = vpop.f32.mrf.mxu0
      %309 = vdwg.mxu0
      %v310 = vmax.f32 %v305, 0.0
      %v311 = vpack.c.bf16 %v310, %v310
      %312 = vst [vmem:[#allocation2] sm:$0xf] %v311
    $region49: #{tpu_custom_call.1} parent=1 // pred_fallthru
      _
    %v313 = vld [vmem:[#allocation2] sm:$0xf]
    %v314 = vld [vmem:[#allocation9] sm:$0xff]
    %v315 = vld [vmem:[#allocation9 + $0x8] sm:$0xff]
    %v316 = vld [vmem:[#allocation9 + $0x10] sm:$0xff]
    %v317 = vld [vmem:[#allocation9 + $0x18] sm:$0xff]
    %v318 = vld [vmem:[#allocation9 + $0x20] sm:$0xff]
    %v319 = vld [vmem:[#allocation9 + $0x28] sm:$0xff]
    %v320 = vld [vmem:[#allocation9 + $0x30] sm:$0xff]
    %v321 = vld [vmem:[#allocation9 + $0x38] sm:$0xff]
    %v322 = vld [vmem:[#allocation9 + $0x40] sm:$0xff]
    %v323 = vld [vmem:[#allocation9 + $0x48] sm:$0xff]
    %v324 = vld [vmem:[#allocation9 + $0x50] sm:$0xff]
    %v325 = vld [vmem:[#allocation9 + $0x58] sm:$0xff]
    %v326 = vld [vmem:[#allocation9 + $0x60] sm:$0xff]
    %v327 = vld [vmem:[#allocation9 + $0x68] sm:$0xff]
    %v328 = vld [vmem:[#allocation9 + $0x70] sm:$0xff]
    %v329 = vld [vmem:[#allocation9 + $0x78] sm:$0xff]
    %v330 = vld [vmem:[%s6] sm:$0x3]
    %v332 = vlaneseq
    %v333 = vshrl.u32 %v332, 7
    %v334 = vsub.s32 0, %v333
    %v335 = vrot.slane %v330, %v334
    %v336 = vlaneseq
    %v337 = vshrl.u32 %v336, 7
    %v338 = vsub.s32 1, %v337
    %v339 = vrot.slane %v330, %v338
    %v358 = vunpack.c.l.b16 %v314
    %v359 = vunpack.c.h.b16 %v314
    %v360 = vunpack.c.l.b16 %v315
    %v361 = vunpack.c.h.b16 %v315
    %v362 = vunpack.c.l.b16 %v316
    %v363 = vunpack.c.h.b16 %v316
    %v364 = vunpack.c.l.b16 %v317
    %v365 = vunpack.c.h.b16 %v317
    %v366 = vunpack.c.l.b16 %v318
    %v367 = vunpack.c.h.b16 %v318
    %v368 = vunpack.c.l.b16 %v319
    %v369 = vunpack.c.h.b16 %v319
    %v370 = vunpack.c.l.b16 %v320
    %v371 = vunpack.c.h.b16 %v320
    %v372 = vunpack.c.l.b16 %v321
    %v373 = vunpack.c.h.b16 %v321
    %v374 = vunpack.c.l.b16 %v322
    %v375 = vunpack.c.h.b16 %v322
    %v376 = vunpack.c.l.b16 %v323
    %v377 = vunpack.c.h.b16 %v323
    %v378 = vunpack.c.l.b16 %v324
    %v379 = vunpack.c.h.b16 %v324
    %v380 = vunpack.c.l.b16 %v325
    %v381 = vunpack.c.h.b16 %v325
    %v382 = vunpack.c.l.b16 %v326
    %v383 = vunpack.c.h.b16 %v326
    %v384 = vunpack.c.l.b16 %v327
    %v385 = vunpack.c.h.b16 %v327
    %v386 = vunpack.c.l.b16 %v328
    %v387 = vunpack.c.h.b16 %v328
    %v388 = vunpack.c.l.b16 %v329
    %v389 = vunpack.c.h.b16 %v329
    %v390 = vpack.c.b16 %v360, %v358
    %v391 = vpack.c.b16 %v361, %v359
    %v392 = vpack.c.b16 %v364, %v362
    %v393 = vpack.c.b16 %v365, %v363
    %v394 = vpack.c.b16 %v368, %v366
    %v395 = vpack.c.b16 %v369, %v367
    %v396 = vpack.c.b16 %v372, %v370
    %v397 = vpack.c.b16 %v373, %v371
    %v398 = vpack.c.b16 %v376, %v374
    %v399 = vpack.c.b16 %v377, %v375
    %v400 = vpack.c.b16 %v380, %v378
    %v401 = vpack.c.b16 %v381, %v379
    %v402 = vpack.c.b16 %v384, %v382
    %v403 = vpack.c.b16 %v385, %v383
    %v404 = vpack.c.b16 %v388, %v386
    %v405 = vpack.c.b16 %v389, %v387
    %422 = vmatprep.subr.bf16.mxu0 %v405
    %423 = vmatpush1.bf16.msra.mxu0 %v404
    %424 = vmatprep.subr.bf16.mxu0 %v403
    %425 = vmatpush1.bf16.msra.mxu0 %v402
    %426 = vmatprep.subr.bf16.mxu0 %v401
    %427 = vmatpush1.bf16.msra.mxu0 %v400
    %428 = vmatprep.subr.bf16.mxu0 %v399
    %429 = vmatpush1.bf16.msra.mxu0 %v398
    %430 = vmatprep.subr.bf16.mxu0 %v397
    %431 = vmatpush1.bf16.msra.mxu0 %v396
    %432 = vmatprep.subr.bf16.mxu0 %v395
    %433 = vmatpush1.bf16.msra.mxu0 %v394
    %434 = vmatprep.subr.bf16.mxu0 %v393
    %435 = vmatpush1.bf16.msra.mxu0 %v392
    %436 = vmatprep.subr.bf16.mxu0 %v391
    %437 = vmatpush1.bf16.msra.mxu0 %v390
    %438 = vmatprep.subr.bf16.mxu0 0
    %439 = vmatpush2.bf16.msra.mxu0 0
    %440 = vmatprep.subr.bf16.mxu0 0
    %441 = vmatpush2.bf16.msra.mxu0 0
    %442 = vmatprep.subr.bf16.mxu0 0
    %443 = vmatpush2.bf16.msra.mxu0 0
    %444 = vmatprep.subr.bf16.mxu0 0
    %445 = vmatpush2.bf16.msra.mxu0 0
    %446 = vmatprep.subr.bf16.mxu0 0
    %447 = vmatpush2.bf16.msra.mxu0 0
    %448 = vmatprep.subr.bf16.mxu0 0
    %449 = vmatpush2.bf16.msra.mxu0 0
    %450 = vmatprep.subr.bf16.mxu0 0
    %451 = vmatpush2.bf16.msra.mxu0 0
    %452 = vmatprep.subr.bf16.mxu0 0
    %453 = vmatpush2.bf16.msra.mxu0 0
    %454 = vmatprep.mubr.bf16.mxu0 0
    %455 = vmatmul.mubr.bf16.gmra.mxu0 %v313
    %v456 = vpop.f32.mrf.mxu0
    %v457 = vadd.f32 %v335, %v456
    %v458 = vpop.f32.mrf.mxu0
    %v459 = vadd.f32 %v339, %v458
    %v460 = vpop.f32.mrf.mxu0
    %v461 = vpop.f32.mrf.mxu0
    %462 = vdwg.mxu0
    %463 = vst [vmem:[#allocation11] sm:$0xff] %v457
    %464 = vst [vmem:[#allocation11 + $0x8] sm:$0xff] %v459
    // Predicated region
    $region50: #{tpu_custom_call.1} parent=1 // pred_check
      _
    $region51: #{tpu_custom_call.1} parent=1 // pred_check_branch
      %466 = sbr.rel (0) target = $region53
    $region52: #{tpu_custom_call.1} parent=1 // pred_region
      %s468 = ssub.s32 256, 256
      %469 = vsyncadd [#allocation5], %s468
      %s471 = sshll.u32 [#allocation11], 4
      %s472 = int_to_ptr.vmem [resolvable:$true] %s471
      %474 = dma.vmem_to_hbm [thread:$0]  %s472, 256, %s7, [#allocation5]
    $region53: #{tpu_custom_call.1} parent=1 // pred_fallthru
      _
    // Predicated region
    $region54: #{tpu_custom_call.1} parent=1 // pred_check
      _
    $region55: #{tpu_custom_call.1} parent=1 // pred_check_branch
      %476 = sbr.rel (0) target = $region57
    $region56: #{tpu_custom_call.1} parent=1 // pred_region
      %477 = dma.done [#allocation5], 256
    $region57: #{tpu_custom_call.1} parent=1 // pred_fallthru
      _
    %478 = vsyncpa [#allocation4], 1
    %479 = vsyncpa [#allocation7], 1
    %480 = vsyncpa [#allocation10], 1
    %481 = vsyncpa [#allocation5], 1

</llo_original>
